<compile_context>
chip_gen: v6e
topology: v6e:2x2x1
jax: 0.10.0
libtpu: 0.0.40
codegen_flags: <defaults>
</compile_context>

<pallas_src>
import math

import jax
import jax.numpy as jnp
from jax.experimental import pallas as pl
from jax.experimental.pallas import tpu as pltpu


def _cdiv(a: int, b: int) -> int:
    return -(-a // b)


def _round_up(a: int, m: int) -> int:
    return _cdiv(a, m) * m


def _sublanes(dtype) -> int:
    # sublanes per packed vreg tile: 8 (f32), 16 (bf16), 32 (int8/fp8)
    return max(8, 32 // jnp.dtype(dtype).itemsize)


def make_pos_encoding(embed_dim: int, max_patch_num: int = 2000,
                      dtype=jnp.float32) -> jnp.ndarray:
    """Deterministic sinusoidal positional-encoding buffer, shape (1, N, E).

    Build it in the activation dtype so the forward pass needs no per-call cast.
    """
    assert embed_dim % 2 == 0, "embed_dim must be even (same constraint as the torch module)"
    position = jnp.arange(0, max_patch_num, dtype=jnp.float32)[:, None]        # (N, 1)
    div_term = jnp.exp(
        jnp.arange(0, embed_dim, 2, dtype=jnp.float32)
        * (-math.log(10000.0) / embed_dim)
    )                                                                           # (E/2,)
    angles = position * div_term                                                # (N, E/2)
    # interleave so that pe[:, 0::2] = sin, pe[:, 1::2] = cos (matches torch code)
    pe = jnp.stack([jnp.sin(angles), jnp.cos(angles)], axis=-1).reshape(
        max_patch_num, embed_dim
    )
    return pe[None, :, :].astype(dtype)                                         # (1, N, E)


def _add_pe_kernel(x_ref, pe_ref, o_ref):
    # Pure VPU add; pe_ref broadcasts over the leading (batch/sublane) dim in the
    # lane-flat path and matches x_ref's shape in the row-fold path.
    o_ref[...] = x_ref[...] + pe_ref[...]


def _forward_rowfold(x, pe_full, *, r, sub, vmem_budget_bytes, cost, donate_x):
    """x as (B, S//r, r*E); PE (full buffer) as (1, N//r, r*E); grid = (row_blocks, B)."""
    B, S, E = x.shape
    N = pe_full.shape[1]
    L = r * E                                  # lane width, multiple of 128
    R = S // r                                 # folded rows per batch element
    NR = N // r
    itemsize = jnp.dtype(x.dtype).itemsize

    x3 = x.reshape(B, R, L)                    # free metadata reshape
    pe3 = pe_full.reshape(1, NR, L)            # full buffer, free reshape (no slice copy)

    # TILE_ROWS: multiple of the sublane count, sized so that x + pe + out blocks,
    # double-buffered, stay inside the VMEM budget.
    bytes_per_row = L * itemsize
    max_rows = (vmem_budget_bytes // (3 * 2 * bytes_per_row)) // sub * sub
    tile_rows = max(sub, min(max_rows, _round_up(R, sub)))
    if B == 1 and R > sub:
        # keep >= 2 grid steps so the parallel axes can split across v7x's two TCs
        tile_rows = min(tile_rows, _round_up(_cdiv(R, 2), sub))
    num_rb = _cdiv(R, tile_rows)

    out3 = pl.pallas_call(
        _add_pe_kernel,
        out_shape=jax.ShapeDtypeStruct((B, R, L), x.dtype),
        grid_spec=pltpu.PrefetchScalarGridSpec(
            num_scalar_prefetch=0,
            grid=(num_rb, B),                  # batch innermost -> PE block reused across it
            in_specs=[
                pl.BlockSpec((1, tile_rows, L), lambda rb, b: (b, rb, 0)),   # activations
                pl.BlockSpec((1, tile_rows, L), lambda rb, b: (0, rb, 0)),   # PE (shared)
            ],
            out_specs=pl.BlockSpec((1, tile_rows, L), lambda rb, b: (b, rb, 0)),
        ),
        compiler_params=pltpu.CompilerParams(
            dimension_semantics=("parallel", "parallel"),
        ),
        cost_estimate=cost,
        input_output_aliases=({0: 0} if donate_x else {}),
    )(x3, pe3)
    return out3.reshape(B, S, E)


def _forward_laneflat(x, pe_full, *, sub, vmem_budget_bytes, cost, donate_x):
    """Fallback: x flattened to (B, S*E); PE (full buffer) flattened to (1, N*E)."""
    B, S, E = x.shape
    N = pe_full.shape[1]
    flat = S * E
    itemsize = jnp.dtype(x.dtype).itemsize

    x2 = x.reshape(B, flat)                    # free contiguous collapse
    pe2 = pe_full.reshape(1, N * E)            # full buffer; grid bounds the DMA to `flat`

    # Padding-aware lane-tile selection: (B, tile) / (1, tile) blocks pad to `sub`
    # sublanes in VMEM; x, pe and out are each double-buffered.
    padded_b = _round_up(B, sub)
    bytes_per_lane = (2 * padded_b + sub) * itemsize * 2
    tile_l = max(128, (vmem_budget_bytes // bytes_per_lane) // 128 * 128)
    tile_l = min(tile_l, _round_up(flat, 128))
    if flat > 128:
        # keep >= 2 grid steps so the "parallel" axis can split across v7x's two TCs
        tile_l = min(tile_l, _round_up(_cdiv(flat, 2), 128))

    out2 = pl.pallas_call(
        _add_pe_kernel,
        out_shape=jax.ShapeDtypeStruct((B, flat), x.dtype),
        grid_spec=pltpu.PrefetchScalarGridSpec(
            num_scalar_prefetch=0,
            grid=(_cdiv(flat, tile_l),),
            in_specs=[
                pl.BlockSpec((B, tile_l), lambda t: (0, t)),   # activations
                pl.BlockSpec((1, tile_l), lambda t: (0, t)),   # PE: each lane tile read once
            ],
            out_specs=pl.BlockSpec((B, tile_l), lambda t: (0, t)),
        ),
        compiler_params=pltpu.CompilerParams(
            dimension_semantics=("parallel",),
        ),
        cost_estimate=cost,
        input_output_aliases=({0: 0} if donate_x else {}),
    )(x2, pe2)
    return out2.reshape(B, S, E)


def positional_encoding_forward(x: jnp.ndarray, pos_encoding: jnp.ndarray, *,
                                vmem_budget_bytes: int = 8 << 20,
                                donate_x: bool = False) -> jnp.ndarray:
    """x: (B, S, E); pos_encoding: (1, N, E) with N >= S.  Returns x + pe[:, :S, :].

    vmem_budget_bytes bounds the padded, double-buffered VMEM footprint of all
    operands (8 MiB default fits v5e's 16 MiB scoped-VMEM default with headroom).
    """
    B, S, E = x.shape
    one, N, E_pe = pos_encoding.shape
    assert one == 1 and E_pe == E and S <= N, "pos_encoding must have shape (1, N>=S, E)"

    if pos_encoding.dtype != x.dtype:
        # NOTE: the torch module would promote (e.g. bf16 x + f32 buffer -> f32 out);
        # here we keep the activation dtype (halves PE/output traffic for bf16).
        # Build the buffer with make_pos_encoding(dtype=x.dtype) to make this a no-op.
        pos_encoding = pos_encoding.astype(x.dtype)

    itemsize = jnp.dtype(x.dtype).itemsize
    sub = _sublanes(x.dtype)
    cost = pl.CostEstimate(
        flops=B * S * E,
        transcendentals=0,
        bytes_accessed=(2 * B + 1) * S * E * itemsize,
    )

    # Fold `r` sequence positions into the sublane axis so the lane width r*E is a
    # multiple of 128 (r = 1 when E already is).  Requires S and N divisible by r.
    r = 128 // math.gcd(E, 128)
    min_rowfold_bytes = 3 * 2 * sub * (r * E) * itemsize
    if S % r == 0 and N % r == 0 and min_rowfold_bytes <= vmem_budget_bytes:
        return _forward_rowfold(x, pos_encoding, r=r, sub=sub,
                                vmem_budget_bytes=vmem_budget_bytes,
                                cost=cost, donate_x=donate_x)
    return _forward_laneflat(x, pos_encoding, sub=sub,
                             vmem_budget_bytes=vmem_budget_bytes,
                             cost=cost, donate_x=donate_x)


if __name__ == "__main__":
    MAX_PATCH_NUM = 2000
    key = jax.random.PRNGKey(0)

    # Primary config consistent with the module (batch=2, seq=8, embed=32), f32.
    B, S, E = 2, 8, 32
    x = jax.random.normal(key, (B, S, E), dtype=jnp.float32)
    pos_encoding = make_pos_encoding(E, MAX_PATCH_NUM, dtype=jnp.float32)   # registered buffer

    out = jax.block_until_ready(positional_encoding_forward(x, pos_encoding))
    ref = x + pos_encoding[:, :S, :]
    assert out.shape == (B, S, E)
    assert jnp.allclose(out, ref, atol=1e-6), "mismatch vs reference (row-fold path)"

    # Ragged config (S not divisible by the fold factor) with a tiny budget:
    # exercises the lane-flat fallback with a multi-step grid and ragged last tile.
    B2, S2, E2 = 3, 9, 32
    x2 = jax.random.normal(jax.random.PRNGKey(0), (B2, S2, E2), dtype=jnp.float32)
    out2 = jax.block_until_ready(
        positional_encoding_forward(x2, pos_encoding, vmem_budget_bytes=32 * 1024))
    ref2 = x2 + pos_encoding[:, :S2, :]
    assert jnp.allclose(out2, ref2, atol=1e-6), "mismatch vs reference (lane-flat path)"

    # bf16 config: buffer built in the activation dtype (no per-call cast),
    # 16-sublane row-fold tiles.
    B3, S3, E3 = 2, 16, 32
    x3 = jax.random.normal(jax.random.PRNGKey(0), (B3, S3, E3), dtype=jnp.bfloat16)
    pe_bf16 = make_pos_encoding(E3, MAX_PATCH_NUM, dtype=jnp.bfloat16)
    out3 = jax.block_until_ready(positional_encoding_forward(x3, pe_bf16))
    ref3 = x3 + pe_bf16[:, :S3, :]
    assert jnp.allclose(out3.astype(jnp.float32), ref3.astype(jnp.float32), atol=1e-2), \
        "mismatch vs reference (bf16 row-fold path)"

    print("KERNEL_OK")
</pallas_src>

<mosaic_0001>
module attributes {stable_mosaic.version = 11 : i64} {
  func.func @_add_pe_kernel(%arg0: i32, %arg1: i32, %arg2: memref<1x8x128xf32, #tpu.memory_space<vmem>>, %arg3: memref<1x8x128xf32, #tpu.memory_space<vmem>>, %arg4: memref<1x8x128xf32, #tpu.memory_space<vmem>>) attributes {dimension_semantics = [#tpu.dimension_semantics<parallel>, #tpu.dimension_semantics<parallel>], iteration_bounds = array<i64: 1, 2>, scalar_prefetch = 0 : i64, scratch_operands = 0 : i64, tpu.core_type = #tpu.core_type<tc>, window_params = [{transform_indices = @transform_0, window_bounds = array<i64: 1, 8, 128>}, {transform_indices = @transform_1, window_bounds = array<i64: 1, 8, 128>}, {transform_indices = @transform_2, window_bounds = array<i64: 1, 8, 128>}]} {
    %c0 = arith.constant 0 : index
    %c0_0 = arith.constant 0 : index
    %c0_1 = arith.constant 0 : index
    %0 = vector.load %arg2[%c0, %c0_0, %c0_1] : memref<1x8x128xf32, #tpu.memory_space<vmem>>, vector<1x8x128xf32>
    %c0_2 = arith.constant 0 : index
    %c0_3 = arith.constant 0 : index
    %c0_4 = arith.constant 0 : index
    %1 = vector.load %arg3[%c0_2, %c0_3, %c0_4] : memref<1x8x128xf32, #tpu.memory_space<vmem>>, vector<1x8x128xf32>
    %2 = arith.addf %0, %1 : vector<1x8x128xf32>
    %c0_5 = arith.constant 0 : index
    %c0_6 = arith.constant 0 : index
    %c0_7 = arith.constant 0 : index
    %3 = vector.load %arg4[%c0_5, %c0_6, %c0_7] : memref<1x8x128xf32, #tpu.memory_space<vmem>>, vector<1x8x128xf32>
    tpu.vector_store %arg4[%c0_5, %c0_6, %c0_7], %2 {strides = array<i32>} : memref<1x8x128xf32, #tpu.memory_space<vmem>>, vector<1x8x128xf32>,
    return
  }
  func.func @transform_0(%arg0: i32, %arg1: i32) -> (i32, i32, i32) {
    %c0_i32 = arith.constant 0 : i32
    %c0_i32_0 = arith.constant 0 : i32
    return %arg1, %arg0, %c0_i32 : i32, i32, i32
  }
  func.func @transform_1(%arg0: i32, %arg1: i32) -> (i32, i32, i32) {
    %c0_i32 = arith.constant 0 : i32
    %c0_i32_0 = arith.constant 0 : i32
    %c0_i32_1 = arith.constant 0 : i32
    return %c0_i32, %arg0, %c0_i32_0 : i32, i32, i32
  }
  func.func @transform_2(%arg0: i32, %arg1: i32) -> (i32, i32, i32) {
    %c0_i32 = arith.constant 0 : i32
    %c0_i32_0 = arith.constant 0 : i32
    return %arg1, %arg0, %c0_i32 : i32, i32, i32
  }
}

</mosaic_0001>

<llo_original>
// kernel: tpu_custom_call.1
$region0: #{tpu_custom_call.1}
  #allocation0 [shape = 'u32[]', space=smem, size = 0x4, offset = 0x4, fixed_abs, tag = 'smem constant byte address 0x4 - core index']
  #allocation1 [shape = 'u32[144,128]{1,0:T(1,128)}', space=vmem, size = 0x12000, scoped, tag = 'internal scratch']
  %s0 = inlined_call_operand.vmem [shape: f32[2,2,128], index: 0, kind: input, shape index: {}]
  %s1 = inlined_call_operand.vmem [shape: f32[1,500,128], index: 1, kind: input, shape index: {}]
  %s2 = inlined_call_operand.hbm [shape: f32[2,2,128], index: 2, kind: output, shape index: {}]
  %s3 = sld [smem:[#allocation0]]
  $region41: #{tpu_custom_call.1} parent=0
    _
  %s5 = ssub.s32 1, %s3
  %s6 = scalar_select 0, %s5, %s3
  $region1: #{tpu_custom_call.1} parent=0
    #allocation2 [shape = 'u8[8192]{0}', space=vmem, size = 0x2000, scoped, tag = 'output window, operand 0']
    #allocation3 [shape = 's32[2]{0}', space=sflag, size = 0x8, scoped, tag = 'scoped memory for tpu_custom_call.1']
    %7 = vsyncpa [#allocation3], 0
    %s8 = scalar_lea.sflag [#allocation3], 1
    %9 = vsyncpa %s8, 0
    loop: start=0, step=1, limit=4
    $region2: #{tpu_custom_call.1} parent=1 // loop_pre_header
      _
    $region3: #{tpu_custom_call.1} parent=1 // loop_header
      %s11 = sphi 0, %s15
      %p12 = scmp.ge.s32.totalorder %s11, 4
      %s18 = sphi 0, %s30
      %s19 = sphi 0, %s26
      %s20 = sphi 0, %s18
      %s21 = sphi 0, %s19
      %s22 = sphi 0, %s20
      %s23 = sphi 0, %s21
      %s35 = sphi 0, %s37
      %s38 = sphi 0, %s35
      %s39 = sphi 0, %s38
      %s55 = sphi 0, %s39
      %s61 = sphi 0, %s63
      %s64 = sphi 0, %s61
      %s65 = sphi 0, %s64
      %s81 = sphi 0, %s65
      %s89 = sphi 0, %s91
      %s92 = sphi 0, %s89
      %s93 = sphi 0, %s92
      %s109 = sphi 0, %s93
    $region4: #{tpu_custom_call.1} parent=1 // loop_header_branch
      %14 = sbr.rel (%p12) target = $region8
    $region5: #{tpu_custom_call.1} parent=1 // loop_body
      %s16 = ssub.s32 %s11, 1
      %s17 = ssub.s32 %s11, 2
      %s24 = sadd.s32 1, %s19
      %p25 = scmp.ge.s32.totalorder %s24, 2
      %s26 = scalar_select %p25, 0, %s24
      %s27 = sadd.s32 1, %s18
      %s28 = scalar_select %p25, %s27, %s18
      %p29 = scmp.ge.s32.totalorder %s28, 1
      %s30 = scalar_select %p29, 0, %s28
      %s31 = ssub.s32 %s19, %s26
      %s32 = ssub.s32 %s18, %s30
      %s33 = sor.u32 %s31, %s32
      %p34 = scmp.eq.s32.totalorder %s33, 0
      %s36 = sadd.s32 %s35, 1
      %s37 = scalar_select %p34, %s35, %s36
      %p40 = pneg %p34
      %p41 = scmp.eq.s32.totalorder %s11, 1
      %p42 = por %p40, %p41
      %p43 = scmp.ne.s32.totalorder %s35, %s38
      %p44 = scmp.eq.s32.totalorder %s11, 0
      %p45 = por %p43, %p44
      %p46 = scmp.ne.s32.totalorder %s35, %s38
      %p47 = scmp.eq.s32.totalorder %s16, 1
      %p48 = por %p46, %p47
      %p49 = scmp.ne.s32.totalorder %s38, %s39
      %p50 = scmp.eq.s32.totalorder %s16, 0
      %p51 = por %p49, %p50
      %p52 = scmp.ne.s32.totalorder %s38, %s39
      %p53 = scmp.eq.s32.totalorder %s17, 1
      %p54 = por %p52, %p53
      %p56 = scmp.ne.s32.totalorder %s39, %s55
      %p57 = scmp.eq.s32.totalorder %s17, 0
      %p58 = por %p56, %p57
      %s59 = ssub.s32 %s18, %s30
      %p60 = scmp.eq.s32.totalorder %s59, 0
      %s62 = sadd.s32 %s61, 1
      %s63 = scalar_select %p60, %s61, %s62
      %p66 = pneg %p60
      %p67 = scmp.eq.s32.totalorder %s11, 1
      %p68 = por %p66, %p67
      %p69 = scmp.ne.s32.totalorder %s61, %s64
      %p70 = scmp.eq.s32.totalorder %s11, 0
      %p71 = por %p69, %p70
      %p72 = scmp.ne.s32.totalorder %s61, %s64
      %p73 = scmp.eq.s32.totalorder %s16, 1
      %p74 = por %p72, %p73
      %p75 = scmp.ne.s32.totalorder %s64, %s65
      %p76 = scmp.eq.s32.totalorder %s16, 0
      %p77 = por %p75, %p76
      %p78 = scmp.ne.s32.totalorder %s64, %s65
      %p79 = scmp.eq.s32.totalorder %s17, 1
      %p80 = por %p78, %p79
      %p82 = scmp.ne.s32.totalorder %s65, %s81
      %p83 = scmp.eq.s32.totalorder %s17, 0
      %p84 = por %p82, %p83
      %s85 = ssub.s32 %s19, %s26
      %s86 = ssub.s32 %s18, %s30
      %s87 = sor.u32 %s85, %s86
      %p88 = scmp.eq.s32.totalorder %s87, 0
      %s90 = sadd.s32 %s89, 1
      %s91 = scalar_select %p88, %s89, %s90
      %p94 = pneg %p88
      %p95 = scmp.eq.s32.totalorder %s11, 1
      %p96 = por %p94, %p95
      %p97 = scmp.ne.s32.totalorder %s89, %s92
      %p98 = scmp.eq.s32.totalorder %s11, 0
      %p99 = por %p97, %p98
      %p100 = scmp.ne.s32.totalorder %s89, %s92
      %p101 = scmp.eq.s32.totalorder %s16, 1
      %p102 = por %p100, %p101
      %p103 = scmp.ne.s32.totalorder %s92, %s93
      %p104 = scmp.eq.s32.totalorder %s16, 0
      %p105 = por %p103, %p104
      %p106 = scmp.ne.s32.totalorder %s92, %s93
      %p107 = scmp.eq.s32.totalorder %s17, 1
      %p108 = por %p106, %p107
      %p110 = scmp.ne.s32.totalorder %s93, %s109
      %p111 = scmp.eq.s32.totalorder %s17, 0
      %p112 = por %p110, %p111
      %p113 = scmp.le.s32.totalorder 1, %s11
      %p114 = scmp.lt.s32.totalorder %s11, 3
      %p115 = pnand %p113, %p114
      %p116 = pneg %p115
      // Predicated region
      $region9: #{tpu_custom_call.1} parent=5 // pred_check
        _
      $region10: #{tpu_custom_call.1} parent=5 // pred_check_branch
        %118 = sbr.rel (%p115) target = $region12
      $region11: #{tpu_custom_call.1} parent=5 // pred_region
        %s119 = ssub.s32 %s11, 1
        // Predicated region
        $region13: #{tpu_custom_call.1} parent=11 // pred_check
          %p120 = pneg %p77
        $region14: #{tpu_custom_call.1} parent=11 // pred_check_branch
          %122 = sbr.rel (%p120) target = $region16
        $region15: #{tpu_custom_call.1} parent=11 // pred_region
          %p123 = scmp.lt.s32.totalorder %s20, 62
          %s124 = scalar_select %p123, %s20, 62
          %s125 = smul.addr %s124, 8
          %s126 = scalar_lea.vmem %s1, %s125
        $region16: #{tpu_custom_call.1} parent=11 // pred_fallthru
          _
      $region12: #{tpu_custom_call.1} parent=5 // pred_fallthru
        _
      %p127 = scmp.lt.s32.totalorder %s11, 2
      // Predicated region
      $region17: #{tpu_custom_call.1} parent=5 // pred_check
        %p128 = pneg %p127
      $region18: #{tpu_custom_call.1} parent=5 // pred_check_branch
        %130 = sbr.rel (%p128) target = $region20
      $region19: #{tpu_custom_call.1} parent=5 // pred_region
        // Predicated region
        $region21: #{tpu_custom_call.1} parent=19 // pred_check
          %p131 = pneg %p45
        $region22: #{tpu_custom_call.1} parent=19 // pred_check_branch
          %133 = sbr.rel (%p131) target = $region24
        $region23: #{tpu_custom_call.1} parent=19 // pred_region
          %s134 = smul.u32 4, %s18
          %s135 = ssub.s32 1, %s134
          %s136 = smul.u32 32, %s135
          %p137 = scmp.lt.s32.totalorder %s19, 1
          %s138 = scalar_select %p137, %s19, 1
          %p139 = scmp.lt.s32.totalorder %s134, 0
          %s140 = scalar_select %p139, %s134, 0
          %s141 = sadd.s32 %s140, %s138
          %s142 = smul.addr %s141, 2
          %s143 = scalar_lea.vmem %s0, %s142
          %s144 = smul.u32 4, %s18
          %s145 = ssub.s32 1, %s144
          %s146 = smul.u32 32, %s145
        $region24: #{tpu_custom_call.1} parent=19 // pred_fallthru
          _
      $region20: #{tpu_custom_call.1} parent=5 // pred_fallthru
        _
      %p147 = scmp.le.s32.totalorder 1, %s11
      %p148 = scmp.lt.s32.totalorder %s11, 3
      %p149 = pnand %p147, %p148
      %p150 = pneg %p149
      // Predicated region
      $region25: #{tpu_custom_call.1} parent=5 // pred_check
        _
      $region26: #{tpu_custom_call.1} parent=5 // pred_check_branch
        %152 = sbr.rel (%p149) target = $region28
      $region27: #{tpu_custom_call.1} parent=5 // pred_region
        %s153 = ssub.s32 %s11, 1
        %s154 = smul.u32 4, %s20
        %s155 = ssub.s32 1, %s154
        %s156 = smul.u32 32, %s155
        %p157 = scmp.lt.s32.totalorder %s21, 1
        %s158 = scalar_select %p157, %s21, 1
        %p159 = scmp.lt.s32.totalorder %s154, 0
        %s160 = scalar_select %p159, %s154, 0
        %s161 = sadd.s32 %s160, %s158
        %s162 = smul.addr %s161, 2
        %s163 = scalar_lea.vmem %s0, %s162
        %p164 = pneg %p51
        %p165 = pneg %p48
        %p166 = scmp.lt.s32.totalorder %s20, 62
        %s167 = scalar_select %p166, %s20, 62
        %s168 = smul.addr %s167, 8
        %s169 = scalar_lea.vmem %s1, %s168
        %p170 = pneg %p77
        %p171 = pneg %p74
        %p172 = pneg %p105
        %p173 = pneg %p102
        %s174 = sand.u32 %s92, 1
        %s175 = scalar_lea.sflag [#allocation3], %s174
        %s176 = sand.u32 %s92, 1
        %s177 = smul.addr %s176, 8
        %s178 = scalar_lea.vmem [#allocation2], %s177
        %s179 = smul.u32 4, %s20
        %s180 = ssub.s32 1, %s179
        %s181 = smul.u32 32, %s180
        %p182 = scmp.lt.s32.totalorder %s21, 1
        %s183 = scalar_select %p182, %s21, 1
        %p184 = scmp.lt.s32.totalorder %s179, 0
        %s185 = scalar_select %p184, %s179, 0
        %s186 = sadd.s32 %s185, %s183
        %s187 = smul.addr %s186, 2
        %s188 = scalar_lea.vmem %s0, %s187
        %s189 = smul.u32 4, %s20
        %s190 = ssub.s32 1, %s189
        %s191 = smul.u32 32, %s190
        %p192 = scmp.lt.s32.totalorder %s20, 62
        %s193 = scalar_select %p192, %s20, 62
        %s194 = smul.addr %s193, 8
        %s195 = scalar_lea.vmem %s1, %s194
        %s196 = smul.u32 4, %s20
        %s197 = ssub.s32 1, %s196
        %s198 = smul.u32 32, %s197
        %v199 = vld [vmem:[%s188] sm:$0xff]
        %v200 = vld [vmem:[%s195] sm:$0xff]
        %v201 = vadd.f32 %v199, %v200
        %202 = vst [vmem:[%s178] sm:$0xff] %v201
        %s203 = sand.u32 %s92, 1
        %s204 = scalar_lea.sflag [#allocation3], %s203
        %s205 = sand.u32 %s92, 1
        %s206 = smul.addr %s205, 8
        %s207 = scalar_lea.vmem [#allocation2], %s206
        // Predicated region
        $region29: #{tpu_custom_call.1} parent=27 // pred_check
          %p208 = pneg %p102
        $region30: #{tpu_custom_call.1} parent=27 // pred_check_branch
          %210 = sbr.rel (%p208) target = $region32
        $region31: #{tpu_custom_call.1} parent=27 // pred_region
          %s211 = smul.u32 4, %s20
          %s212 = ssub.s32 1, %s211
          %s213 = smul.u32 32, %s212
          %s215 = ssub.s32 128, %s213
          %216 = vsyncadd %s204, %s215
          %p217 = scmp.ne.s32.totalorder 0, %s213
          %s218 = sadd.s32 %s211, %s21
          %s219 = smul.addr %s218, 32
          %s220 = scalar_lea.hbm %s2, %s219
          %s221 = smul.u32 2, %s212
          %s222 = sshll.u32 %s207, 4
          %s223 = int_to_ptr.vmem [resolvable:$true] %s222
          %s224 = sshll.u32 %s221, 4
          %228 = dma.vmem_to_hbm [thread:$0]  (%p217), %s223, %s224, %s220, %s204, 32, 32, 2
        $region32: #{tpu_custom_call.1} parent=27 // pred_fallthru
          _
      $region28: #{tpu_custom_call.1} parent=5 // pred_fallthru
        _
      %p229 = scmp.le.s32.totalorder 2, %s11
      // Predicated region
      $region33: #{tpu_custom_call.1} parent=5 // pred_check
        %p230 = pneg %p229
      $region34: #{tpu_custom_call.1} parent=5 // pred_check_branch
        %232 = sbr.rel (%p230) target = $region36
      $region35: #{tpu_custom_call.1} parent=5 // pred_region
        %s233 = ssub.s32 %s11, 2
        // Predicated region
        $region37: #{tpu_custom_call.1} parent=35 // pred_check
          %p234 = pneg %p108
        $region38: #{tpu_custom_call.1} parent=35 // pred_check_branch
          %236 = sbr.rel (%p234) target = $region40
        $region39: #{tpu_custom_call.1} parent=35 // pred_region
          %s237 = sand.u32 %s93, 1
          %s238 = scalar_lea.sflag [#allocation3], %s237
          %s239 = sand.u32 %s93, 1
          %s240 = smul.addr %s239, 8
          %s241 = scalar_lea.vmem [#allocation2], %s240
          %242 = dma.done %s238, 128
        $region40: #{tpu_custom_call.1} parent=35 // pred_fallthru
          _
      $region36: #{tpu_custom_call.1} parent=5 // pred_fallthru
        _
    $region6: #{tpu_custom_call.1} parent=1 // loop_footer
      %s15 = sadd.s32 1, %s11
    $region7: #{tpu_custom_call.1} parent=1 // loop_footer_branch
      %10 = sbr.rel target = $region3
    $region8: #{tpu_custom_call.1} parent=1 // loop_exit
      _
    %243 = vsyncpa [#allocation3], 1
    %s244 = scalar_lea.sflag [#allocation3], 1
    %245 = vsyncpa %s244, 1

</llo_original>
